<compile_context>
chip_gen: v6e
topology: v6e:2x2x1
jax: 0.10.0
libtpu: 0.0.40
codegen_flags: <defaults>
</compile_context>

<pallas_src>
import jax
import jax.numpy as jnp
from jax.experimental import pallas as pl
from jax.experimental.pallas import tpu as pltpu

_LANES = 128
_TARGET_TILE_BYTES = 2 << 20           # ~2 MiB of *input* data per block
_VMEM_LIMIT_BYTES = 32 * 1024 * 1024   # explicit scoped-VMEM budget (all gens)


# ---------------------------------------------------------------------------
# Kernels
# ---------------------------------------------------------------------------
def _to_rgb_dense_kernel(x_ref, o_ref):
    # x_ref: (R_TILE, 128) VMEM, o_ref: (3, R_TILE, 128) VMEM.
    v = x_ref[...]
    o_ref[0, :, :] = v
    o_ref[1, :, :] = v
    o_ref[2, :, :] = v


def _to_rgb_flat_kernel(x_ref, o_ref):
    # Fallback path. x_ref: (1, TILE_N) VMEM, o_ref: (3, TILE_N) VMEM.
    o_ref[...] = jnp.broadcast_to(x_ref[...], o_ref.shape)


# ---------------------------------------------------------------------------
# Tile pickers
# ---------------------------------------------------------------------------
def _sublane_multiple(itemsize):
    # Minimal packed sublane tile: 8 (32-bit), 16 (16-bit), 32 (8-bit).
    return max(8, 32 // itemsize)


def _pick_rows_tile(rows, itemsize, tile_bytes):
    """Rows-per-block for the dense (rows, 128) layout."""
    sub = _sublane_multiple(itemsize)
    bytes_per_row = _LANES * itemsize
    total_bytes = rows * bytes_per_row

    # Rows per tile from the input-byte budget, rounded to the packed multiple.
    r = max(sub, (tile_bytes // bytes_per_row) // sub * sub)

    # Never collapse a non-tiny image into a single unpipelined / single-TC
    # block: force grid >= 4 once the input exceeds ~512 KiB.
    if total_bytes > (512 << 10):
        cap = max(sub, (rows // 4) // sub * sub)
        r = min(r, cap)

    # r is either a multiple of `sub` or clamped to the full extent (legal).
    return min(r, rows)


def _pick_tile_n(n, itemsize, tile_bytes):
    """Lane tile for the flat fallback layout."""
    # (1, tile_n)/(3, tile_n) blocks pad to >=8 sublanes in VMEM, so keep the
    # nominal input tile <= 256 KiB; the padded double-buffered set then stays
    # well under every generation's scoped-VMEM budget.
    tile_bytes = min(tile_bytes, 256 << 10)
    max_elems = max(_LANES, tile_bytes // itemsize)
    if n <= max_elems:
        return n                                  # full array (always legal)
    return max(_LANES, (max_elems // _LANES) * _LANES)


# ---------------------------------------------------------------------------
# Wrapper
# ---------------------------------------------------------------------------
def to_rgb(x, *, tile_bytes=_TARGET_TILE_BYTES):
    """Pallas implementation of ToRGB.forward for a (C, H, W) array."""
    assert x.ndim == 3 and x.shape[0] in (1, 3), "expected (C,H,W) with C in {1,3}"
    c, h, w = x.shape

    if c == 3:
        # PyTorch forward is the identity here: no kernel, no copy.
        return x

    n = h * w
    itemsize = jnp.dtype(x.dtype).itemsize
    compiler_params = pltpu.CompilerParams(
        # Independent blocks: lets v7x shard the grid across its 2 TCs;
        # neutral on single-TC v5e/v6e.
        dimension_semantics=("parallel",),
        vmem_limit_bytes=_VMEM_LIMIT_BYTES,
    )

    if n % _LANES == 0:
        # -------- dense (rows, 128) path: sublane- and lane-dense blocks ----
        rows = n // _LANES
        x2d = x.reshape(rows, _LANES)
        r_tile = _pick_rows_tile(rows, itemsize, tile_bytes)
        grid = (pl.cdiv(rows, r_tile),)

        out = pl.pallas_call(
            _to_rgb_dense_kernel,
            out_shape=jax.ShapeDtypeStruct((3, rows, _LANES), x.dtype),
            grid=grid,
            in_specs=[pl.BlockSpec((r_tile, _LANES), lambda i: (i, 0))],
            out_specs=pl.BlockSpec((3, r_tile, _LANES), lambda i: (0, i, 0)),
            compiler_params=compiler_params,
        )(x2d)
        return out.reshape(3, h, w)

    # -------- fallback flat (1, N) path (H*W not a multiple of 128) --------
    x_flat = x.reshape(1, n)
    tile_n = _pick_tile_n(n, itemsize, tile_bytes)
    grid = (pl.cdiv(n, tile_n),)

    out_flat = pl.pallas_call(
        _to_rgb_flat_kernel,
        out_shape=jax.ShapeDtypeStruct((3, n), x.dtype),
        grid=grid,
        in_specs=[pl.BlockSpec((1, tile_n), lambda i: (0, i))],
        out_specs=pl.BlockSpec((3, tile_n), lambda i: (0, i)),
        compiler_params=compiler_params,
    )(x_flat)
    return out_flat.reshape(3, h, w)


def to_rgb_ref(x):
    """Pure-JAX reference matching the PyTorch forward exactly."""
    if x.shape[0] == 1:
        return jnp.concatenate([x, x, x], axis=0)
    return x


# ---------------------------------------------------------------------------
# Self-test
# ---------------------------------------------------------------------------
if __name__ == "__main__":
    key = jax.random.PRNGKey(0)
    k1, k2, k3, k4, k5, k6 = jax.random.split(key, 6)

    # Case 1: tiny single-channel f32 -> dense path, single full block.
    x1 = jax.random.normal(k1, (1, 16, 16), dtype=jnp.float32)
    y1 = jax.block_until_ready(to_rgb(x1))
    assert y1.shape == (3, 16, 16)
    assert jnp.array_equal(y1, to_rgb_ref(x1))

    # Case 2: dense path, forced small tile -> multi-block pipelined grid
    # (rows = 64, r_tile = 8, grid = 8).
    x2 = jax.random.normal(k2, (1, 64, 128), dtype=jnp.float32)
    y2 = jax.block_until_ready(to_rgb(x2, tile_bytes=4 * 1024))
    assert y2.shape == (3, 64, 128)
    assert jnp.array_equal(y2, to_rgb_ref(x2))

    # Case 3: H*W not a multiple of 128 -> flat fallback path, partial last
    # block (n = 1728, tile = 128, grid = 14).
    x3 = jax.random.normal(k3, (1, 24, 72), dtype=jnp.float32)
    y3 = jax.block_until_ready(to_rgb(x3, tile_bytes=512))
    assert y3.shape == (3, 24, 72)
    assert jnp.array_equal(y3, to_rgb_ref(x3))

    # Case 4: already-RGB input -> identity, no kernel launch, no copy.
    x4 = jax.random.normal(k4, (3, 16, 16), dtype=jnp.float32)
    y4 = to_rgb(x4)
    assert y4 is x4
    assert jnp.array_equal(y4, to_rgb_ref(x4))

    # Case 5: uint8 (typical dataset-pipeline dtype) -> dense path with the
    # packed 32-row sublane multiple; full-extent block is legal at this size.
    x5 = jax.random.randint(k5, (1, 32, 32), 0, 255, dtype=jnp.uint8)
    y5 = jax.block_until_ready(to_rgb(x5))
    assert y5.shape == (3, 32, 32)
    assert jnp.array_equal(y5, to_rgb_ref(x5))

    # Case 6: realistic image size (512x512 f32, 1 MiB input) -> dense path,
    # grid forced to >= 4 blocks (rows = 2048, r_tile = 512, grid = 4) so the
    # pipeline double-buffers and v7x can use both TensorCores.
    x6 = jax.random.normal(k6, (1, 512, 512), dtype=jnp.float32)
    y6 = jax.block_until_ready(to_rgb(x6))
    assert y6.shape == (3, 512, 512)
    assert jnp.array_equal(y6, to_rgb_ref(x6))

    print("KERNEL_OK")
</pallas_src>

<mosaic_0001>
module attributes {stable_mosaic.version = 11 : i64} {
  func.func @_to_rgb_dense_kernel(%arg0: i32, %arg1: memref<2x128xf32, #tpu.memory_space<vmem>>, %arg2: memref<3x2x128xf32, #tpu.memory_space<vmem>>) attributes {dimension_semantics = [#tpu.dimension_semantics<parallel>], iteration_bounds = array<i64: 1>, scalar_prefetch = 0 : i64, scratch_operands = 0 : i64, tpu.core_type = #tpu.core_type<tc>, window_params = [{transform_indices = @transform_0, window_bounds = array<i64: 2, 128>}, {transform_indices = @transform_1, window_bounds = array<i64: 3, 2, 128>}]} {
    %c0 = arith.constant 0 : index
    %c0_0 = arith.constant 0 : index
    %0 = vector.load %arg1[%c0, %c0_0] : memref<2x128xf32, #tpu.memory_space<vmem>>, vector<2x128xf32>
    %c0_1 = arith.constant 0 : index
    %c0_2 = arith.constant 0 : index
    %c0_3 = arith.constant 0 : index
    %1 = vector.load %arg2[%c0_1, %c0_2, %c0_3] : memref<3x2x128xf32, #tpu.memory_space<vmem>>, vector<1x2x128xf32>
    %2 = vector.shape_cast %1 : vector<1x2x128xf32> to vector<2x128xf32>
    %3 = vector.shape_cast %0 : vector<2x128xf32> to vector<1x2x128xf32>
    tpu.vector_store %arg2[%c0_1, %c0_2, %c0_3], %3 {strides = array<i32>} : memref<3x2x128xf32, #tpu.memory_space<vmem>>, vector<1x2x128xf32>,
    %c1 = arith.constant 1 : index
    %c0_4 = arith.constant 0 : index
    %c0_5 = arith.constant 0 : index
    %4 = vector.load %arg2[%c1, %c0_4, %c0_5] : memref<3x2x128xf32, #tpu.memory_space<vmem>>, vector<1x2x128xf32>
    %5 = vector.shape_cast %4 : vector<1x2x128xf32> to vector<2x128xf32>
    %6 = vector.shape_cast %0 : vector<2x128xf32> to vector<1x2x128xf32>
    tpu.vector_store %arg2[%c1, %c0_4, %c0_5], %6 {strides = array<i32>} : memref<3x2x128xf32, #tpu.memory_space<vmem>>, vector<1x2x128xf32>,
    %c2 = arith.constant 2 : index
    %c0_6 = arith.constant 0 : index
    %c0_7 = arith.constant 0 : index
    %7 = vector.load %arg2[%c2, %c0_6, %c0_7] : memref<3x2x128xf32, #tpu.memory_space<vmem>>, vector<1x2x128xf32>
    %8 = vector.shape_cast %7 : vector<1x2x128xf32> to vector<2x128xf32>
    %9 = vector.shape_cast %0 : vector<2x128xf32> to vector<1x2x128xf32>
    tpu.vector_store %arg2[%c2, %c0_6, %c0_7], %9 {strides = array<i32>} : memref<3x2x128xf32, #tpu.memory_space<vmem>>, vector<1x2x128xf32>,
    return
  }
  func.func @transform_0(%arg0: i32) -> (i32, i32) {
    %c0_i32 = arith.constant 0 : i32
    %c0_i32_0 = arith.constant 0 : i32
    return %arg0, %c0_i32 : i32, i32
  }
  func.func @transform_1(%arg0: i32) -> (i32, i32, i32) {
    %c0_i32 = arith.constant 0 : i32
    %c0_i32_0 = arith.constant 0 : i32
    %c0_i32_1 = arith.constant 0 : i32
    return %c0_i32, %arg0, %c0_i32_0 : i32, i32, i32
  }
}

</mosaic_0001>

<llo_original>
// kernel: tpu_custom_call.1
$region0: #{tpu_custom_call.1}
  #allocation0 [shape = 'u32[]', space=smem, size = 0x4, offset = 0x4, fixed_abs, tag = 'smem constant byte address 0x4 - core index']
  #allocation1 [shape = 'u32[144,128]{1,0:T(1,128)}', space=vmem, size = 0x12000, scoped, tag = 'internal scratch']
  %s0 = inlined_call_operand.hbm [shape: f32[2,128], index: 0, kind: input, shape index: {}]
  %s1 = inlined_call_operand.hbm [shape: f32[3,2,128], index: 1, kind: output, shape index: {}]
  %s2 = sld [smem:[#allocation0]]
  $region18: #{tpu_custom_call.1} parent=0
    _
  %s4 = ssub.s32 1, %s2
  %s5 = scalar_select 0, %s4, %s2
  $region1: #{tpu_custom_call.1} parent=0
    #allocation2 [shape = 'u8[1024]{0}', space=vmem, size = 0x400, scoped, tag = 'input window, operand 0, single buffered']
    #allocation3 [shape = 's32[1]{0}', space=sflag, size = 0x4, scoped, tag = 'scoped memory for tpu_custom_call.1']
    #allocation4 [shape = 's32[1]{0}', space=sflag, size = 0x4, scoped, tag = 'scoped memory for tpu_custom_call.1']
    #allocation5 [shape = 'u8[3072]{0}', space=vmem, size = 0xc00, scoped, tag = 'output window, operand 0, single buffered']
    %6 = vsyncpa [#allocation3], 0
    %7 = vsyncpa [#allocation4], 0
    // Predicated region
    $region2: #{tpu_custom_call.1} parent=1 // pred_check
      _
    $region3: #{tpu_custom_call.1} parent=1 // pred_check_branch
      %9 = sbr.rel (0) target = $region5
    $region4: #{tpu_custom_call.1} parent=1 // pred_region
      %s11 = ssub.s32 32, 32
      %12 = vsyncadd [#allocation3], %s11
      %s14 = sshll.u32 [#allocation2], 4
      %s15 = int_to_ptr.vmem [resolvable:$true] %s14
      %17 = dma.hbm_to_vmem [thread:$0]  %s0, 32, %s15, [#allocation3]
    $region5: #{tpu_custom_call.1} parent=1 // pred_fallthru
      _
    // Predicated region
    $region6: #{tpu_custom_call.1} parent=1 // pred_check
      _
    $region7: #{tpu_custom_call.1} parent=1 // pred_check_branch
      %19 = sbr.rel (0) target = $region9
    $region8: #{tpu_custom_call.1} parent=1 // pred_region
      %20 = dma.done [#allocation3], 32
    $region9: #{tpu_custom_call.1} parent=1 // pred_fallthru
      _
    %v21 = vld [vmem:[#allocation2] sm:$0x3]
    %22 = vst [vmem:[#allocation5] sm:$0x3] %v21
    %s23 = scalar_lea.vmem [#allocation5], 2
    %24 = vst [vmem:[%s23] sm:$0x3] %v21
    %s25 = scalar_lea.vmem [#allocation5], 4
    %26 = vst [vmem:[%s25] sm:$0x3] %v21
    // Predicated region
    $region10: #{tpu_custom_call.1} parent=1 // pred_check
      _
    $region11: #{tpu_custom_call.1} parent=1 // pred_check_branch
      %28 = sbr.rel (0) target = $region13
    $region12: #{tpu_custom_call.1} parent=1 // pred_region
      %s30 = ssub.s32 96, 96
      %31 = vsyncadd [#allocation4], %s30
      %s32 = sshll.u32 [#allocation5], 4
      %s33 = int_to_ptr.vmem [resolvable:$true] %s32
      %38 = dma.vmem_to_hbm [thread:$0]  %s33, 96, %s1, [#allocation4], 32, 32, 2
    $region13: #{tpu_custom_call.1} parent=1 // pred_fallthru
      _
    // Predicated region
    $region14: #{tpu_custom_call.1} parent=1 // pred_check
      _
    $region15: #{tpu_custom_call.1} parent=1 // pred_check_branch
      %40 = sbr.rel (0) target = $region17
    $region16: #{tpu_custom_call.1} parent=1 // pred_region
      %41 = dma.done [#allocation4], 96
    $region17: #{tpu_custom_call.1} parent=1 // pred_fallthru
      _
    %42 = vsyncpa [#allocation3], 1
    %43 = vsyncpa [#allocation4], 1

</llo_original>
